<compile_context>
chip_gen: v7x
topology: tpu7x:2x2x1
jax: 0.10.0
libtpu: 0.0.40
codegen_flags: <defaults>
</compile_context>

<pallas_src>
import functools

import jax
import jax.numpy as jnp
from jax.experimental import pallas as pl
from jax.experimental.pallas import tpu as pltpu


def _fused_feature_extractor_kernel(x_ref, w1_ref, b1_ref, w2_ref, b2_ref,
                                    mask_ref, o_ref, *, hh, wh):
    """Fused conv(3x3,s=2)+LReLU -> conv(3x3,s=1)+LReLU for one batch element.

    x_ref:   (1, 4*C_in, (hh+4)*(wh+3))  space-to-depth input, flat spatial (bf16)
    w1_ref:  (C_out, 16*C_in)            conv1 weights, im2col layout (bf16)
    b1_ref:  (C_out, 1)                  conv1 bias (f32)
    w2_ref:  (C_out, 9*C_out)            conv2 weights, im2col layout (bf16)
    b2_ref:  (C_out, 1)                  conv2 bias (f32)
    mask_ref:(1, (hh+2)*(wh+3)+2)        0/1 interior mask of padded intermediate
    o_ref:   (1, C_out, hh*wh)           output, channels-first, flat spatial
    """
    rs = wh + 3                      # row stride of the flattened spatial axis
    l1 = (hh + 2) * rs + 2           # conv1 "extended" output length (incl. halo)
    l2 = hh * rs                     # conv2 wide output length

    # ---- conv1: 2x2 valid conv on the space-to-depth input -> ONE matmul ----
    # 4 shifted tap slices of the ref, concatenated along sublanes.
    x1 = jnp.concatenate(
        [x_ref[0, :, pl.ds(dh * rs + dw, l1)]
         for dh in (0, 1) for dw in (0, 1)],
        axis=0)                                              # (16*C_in, l1)
    y1 = jnp.dot(w1_ref[...], x1, preferred_element_type=jnp.float32)
    y1 = y1 + b1_ref[...]
    y1 = jnp.where(y1 > 0, y1, 0.1 * y1)                     # LeakyReLU(0.1)
    # Zero the pad=1 halo (and flat-layout slack columns): z is exactly the
    # zero-padded intermediate, stored with row stride rs.
    z = (y1 * mask_ref[...]).astype(x_ref.dtype)             # bf16 MXU operand

    # ---- conv2: 3x3 stride-1 conv on the padded intermediate -> ONE matmul ----
    x2 = jnp.concatenate(
        [z[:, kh * rs + kw: kh * rs + kw + l2]
         for kh in (0, 1, 2) for kw in (0, 1, 2)],
        axis=0)                                              # (9*C_out, l2)
    y2 = jnp.dot(w2_ref[...], x2, preferred_element_type=jnp.float32)
    y2 = y2 + b2_ref[...]
    y2 = jnp.where(y2 > 0, y2, 0.1 * y2)                     # LeakyReLU(0.1)

    # Compact valid columns (drop per-row slack lanes) and store the whole
    # (C_out, hh*wh) slab with a single lane-dense store.
    out = jnp.concatenate([y2[:, i * rs: i * rs + wh] for i in range(hh)],
                          axis=-1)                           # (C_out, hh*wh)
    o_ref[0] = out.astype(o_ref.dtype)


def pack_feature_extractor_params(params):
    """One-time repack of PyTorch-layout params (OIHW) to the kernel layout."""
    w1, b1 = params["w1"], params["b1"]
    w2, b2 = params["w2"], params["b2"]
    c_out, c_in = w1.shape[0], w1.shape[1]
    # conv1 (3x3, stride 2) as a 2x2 conv over the space-to-depth input:
    # pad taps 3x3 -> 4x4 with zeros, split kh->(dh,ph), kw->(dw,pw),
    # order columns as (dh, dw, ph, pw, c) to match the kernel's im2col concat.
    w1p = jnp.pad(w1, ((0, 0), (0, 0), (0, 1), (0, 1)))          # (o, c, 4, 4)
    w1m = (w1p.reshape(c_out, c_in, 2, 2, 2, 2)
              .transpose(0, 2, 4, 3, 5, 1)
              .reshape(c_out, 16 * c_in))
    # conv2 (3x3, stride 1): columns ordered (kh, kw, c_mid).
    w2m = w2.transpose(0, 2, 3, 1).reshape(c_out, 9 * c_out)
    return {
        "w1m": w1m.astype(jnp.bfloat16),
        "w2m": w2m.astype(jnp.bfloat16),
        "b1": b1.reshape(c_out, 1).astype(jnp.float32),
        "b2": b2.reshape(c_out, 1).astype(jnp.float32),
    }


def feature_extractor_forward(packed, x_nchw):
    """Matches FeatureExtractor.forward: conv(s=2)+LReLU, conv(s=1)+LReLU.

    Input/output are NCHW like PyTorch; both convs run in one fused kernel.
    """
    n, c_in, h, w = x_nchw.shape
    c_out = packed["w1m"].shape[0]
    assert packed["w1m"].shape[1] == 16 * c_in
    assert h % 2 == 0 and w % 2 == 0, "even spatial sizes expected"
    # TODO(synk): odd spatial sizes (PyTorch floor semantics) not supported here.
    hh, wh = h // 2, w // 2
    rs = wh + 3                    # kernel row stride (W halo + flat-shift slack)
    hs = hh + 4                    # space-to-depth rows (H halo + slack row)
    l1 = (hh + 2) * rs + 2

    # Space-to-depth(2) with the conv1 pad folded in (done once in the wrapper):
    #   xs2d[n, (ph,pw,c), a*rs + b] = x[n, c, 2a+ph-3, 2b+pw-3]  (zeros outside)
    xp = jnp.pad(x_nchw, ((0, 0), (0, 0), (3, 5), (3, 3)))
    xs2d = (xp.reshape(n, c_in, hs, 2, rs, 2)
              .transpose(0, 3, 5, 1, 2, 4)
              .reshape(n, 4 * c_in, hs * rs)
              .astype(jnp.bfloat16))

    # 0/1 mask selecting the interior of the zero-padded conv1 output (flat).
    cols = jnp.arange(l1, dtype=jnp.int32)
    ii, jj = cols // rs, cols % rs
    mask = (((ii >= 1) & (ii <= hh) & (jj >= 1) & (jj <= wh))
            .astype(jnp.float32).reshape(1, l1))

    kernel = functools.partial(_fused_feature_extractor_kernel, hh=hh, wh=wh)

    flops = 2 * n * c_out * (16 * c_in * l1 + 9 * c_out * (hh * rs))
    bytes_accessed = (xs2d.size * 2 + packed["w1m"].size * 2
                      + packed["w2m"].size * 2 + (2 * c_out + l1) * 4
                      + n * c_out * hh * wh * 4)

    out = pl.pallas_call(
        kernel,
        out_shape=jax.ShapeDtypeStruct((n, c_out, hh * wh), jnp.float32),
        grid_spec=pl.GridSpec(
            grid=(n,),
            in_specs=[
                pl.BlockSpec((1, 4 * c_in, hs * rs), lambda i: (i, 0, 0)),
                pl.BlockSpec((c_out, 16 * c_in), lambda i: (0, 0)),
                pl.BlockSpec((c_out, 1), lambda i: (0, 0)),
                pl.BlockSpec((c_out, 9 * c_out), lambda i: (0, 0)),
                pl.BlockSpec((c_out, 1), lambda i: (0, 0)),
                pl.BlockSpec((1, l1), lambda i: (0, 0)),
            ],
            out_specs=pl.BlockSpec((1, c_out, hh * wh), lambda i: (i, 0, 0)),
        ),
        compiler_params=pltpu.CompilerParams(
            dimension_semantics=("parallel",)),
        cost_estimate=pl.CostEstimate(flops=flops, transcendentals=0,
                                      bytes_accessed=bytes_accessed),
    )(xs2d, packed["w1m"], packed["b1"], packed["w2m"], packed["b2"], mask)

    return out.reshape(n, c_out, hh, wh)   # already NCHW; metadata-only reshape


def init_feature_extractor_params(key, ch_in, ch_out):
    """Deterministic parameter init; PyTorch Conv2d weight layout (O, I, kH, kW)."""
    k1, k2, k3, k4 = jax.random.split(key, 4)
    w1 = jax.random.normal(k1, (ch_out, ch_in, 3, 3), jnp.float32) * 0.1
    b1 = jax.random.normal(k2, (ch_out,), jnp.float32) * 0.1
    w2 = jax.random.normal(k3, (ch_out, ch_out, 3, 3), jnp.float32) * 0.1
    b2 = jax.random.normal(k4, (ch_out,), jnp.float32) * 0.1
    return {"w1": w1, "b1": b1, "w2": w2, "b2": b2}


def _reference_forward(params, x_nchw):
    """Pure-JAX f32 reference (lax conv) for validation."""
    def conv_lrelu(x, w_oihw, b, stride):
        y = jax.lax.conv_general_dilated(
            x, w_oihw, window_strides=(stride, stride),
            padding=((1, 1), (1, 1)),
            dimension_numbers=("NCHW", "OIHW", "NCHW"))
        y = y + b.reshape(1, -1, 1, 1)
        return jnp.where(y > 0, y, 0.1 * y)
    y = conv_lrelu(x_nchw, params["w1"], params["b1"], 2)
    return conv_lrelu(y, params["w2"], params["b2"], 1)


if __name__ == "__main__":
    key = jax.random.PRNGKey(0)
    k_x, k_p = jax.random.split(key)

    N, CH_IN, CH_OUT, H, W = 2, 4, 8, 16, 16
    x = jax.random.normal(k_x, (N, CH_IN, H, W), jnp.float32)
    params = init_feature_extractor_params(k_p, CH_IN, CH_OUT)

    packed = pack_feature_extractor_params(params)   # one-time weight repack
    fwd = jax.jit(feature_extractor_forward)
    out = jax.block_until_ready(fwd(packed, x))

    ref = _reference_forward(params, x)
    assert out.shape == (N, CH_OUT, H // 2, W // 2), out.shape
    max_err = float(jnp.max(jnp.abs(out - ref)))
    # bf16 MXU operands with f32 accumulation -> bf16-level tolerance vs f32 ref.
    assert jnp.allclose(out, ref, rtol=3e-2, atol=3e-2), (
        f"mismatch vs lax reference (max abs err {max_err})")

    print("KERNEL_OK")
</pallas_src>

<mosaic_0001>
module attributes {stable_mosaic.version = 11 : i64} {
  func.func @_fused_feature_extractor_kernel(%arg0: i32, %arg1: memref<1x16x132xbf16, #tpu.memory_space<vmem>>, %arg2: memref<8x64xbf16, #tpu.memory_space<vmem>>, %arg3: memref<8x1xf32, #tpu.memory_space<vmem>>, %arg4: memref<8x72xbf16, #tpu.memory_space<vmem>>, %arg5: memref<8x1xf32, #tpu.memory_space<vmem>>, %arg6: memref<1x112xf32, #tpu.memory_space<vmem>>, %arg7: memref<1x8x64xf32, #tpu.memory_space<vmem>>) attributes {dimension_semantics = [#tpu.dimension_semantics<parallel>], iteration_bounds = array<i64: 2>, scalar_prefetch = 0 : i64, scratch_operands = 0 : i64, tpu.core_type = #tpu.core_type<tc>, window_params = [{transform_indices = @transform_0, window_bounds = array<i64: 1, 16, 132>}, {pipeline_mode = #tpu.pipeline_mode<synchronous>, transform_indices = @transform_1, window_bounds = array<i64: 8, 64>}, {pipeline_mode = #tpu.pipeline_mode<synchronous>, transform_indices = @transform_2, window_bounds = array<i64: 8, 1>}, {pipeline_mode = #tpu.pipeline_mode<synchronous>, transform_indices = @transform_3, window_bounds = array<i64: 8, 72>}, {pipeline_mode = #tpu.pipeline_mode<synchronous>, transform_indices = @transform_4, window_bounds = array<i64: 8, 1>}, {pipeline_mode = #tpu.pipeline_mode<synchronous>, transform_indices = @transform_5, window_bounds = array<i64: 1, 112>}, {transform_indices = @transform_6, window_bounds = array<i64: 1, 8, 64>}]} {
    %c0 = arith.constant 0 : index
    %c0_0 = arith.constant 0 : index
    %c0_1 = arith.constant 0 : index
    %0 = vector.load %arg1[%c0, %c0_0, %c0_1] : memref<1x16x132xbf16, #tpu.memory_space<vmem>>, vector<1x16x112xbf16>
    %1 = vector.shape_cast %0 : vector<1x16x112xbf16> to vector<16x112xbf16>
    %c0_2 = arith.constant 0 : index
    %c0_3 = arith.constant 0 : index
    %c1 = arith.constant 1 : index
    %2 = vector.load %arg1[%c0_2, %c0_3, %c1] : memref<1x16x132xbf16, #tpu.memory_space<vmem>>, vector<1x16x112xbf16>
    %3 = vector.shape_cast %2 : vector<1x16x112xbf16> to vector<16x112xbf16>
    %c0_4 = arith.constant 0 : index
    %c0_5 = arith.constant 0 : index
    %c11 = arith.constant 11 : index
    %4 = vector.load %arg1[%c0_4, %c0_5, %c11] : memref<1x16x132xbf16, #tpu.memory_space<vmem>>, vector<1x16x112xbf16>
    %5 = vector.shape_cast %4 : vector<1x16x112xbf16> to vector<16x112xbf16>
    %c0_6 = arith.constant 0 : index
    %c0_7 = arith.constant 0 : index
    %c12 = arith.constant 12 : index
    %6 = vector.load %arg1[%c0_6, %c0_7, %c12] : memref<1x16x132xbf16, #tpu.memory_space<vmem>>, vector<1x16x112xbf16>
    %7 = vector.shape_cast %6 : vector<1x16x112xbf16> to vector<16x112xbf16>
    %8 = tpu.concatenate %1, %3, %5, %7 in 0 : vector<16x112xbf16>, vector<16x112xbf16>, vector<16x112xbf16>, vector<16x112xbf16> -> vector<64x112xbf16>
    %c0_8 = arith.constant 0 : index
    %c0_9 = arith.constant 0 : index
    %9 = vector.load %arg2[%c0_8, %c0_9] : memref<8x64xbf16, #tpu.memory_space<vmem>>, vector<8x64xbf16>
    %cst = arith.constant dense<0.000000e+00> : vector<8x112xf32>
    %10 = tpu.matmul %9, %8, %cst {dimension_numbers = #tpu.dot_dimension_numbers<[1], [0], [0], [1], [0, 0, 1, 1], [], []>} : vector<8x64xbf16>, vector<64x112xbf16>, vector<8x112xf32> -> vector<8x112xf32>
    %c0_10 = arith.constant 0 : index
    %c0_11 = arith.constant 0 : index
    %11 = vector.load %arg3[%c0_10, %c0_11] : memref<8x1xf32, #tpu.memory_space<vmem>>, vector<8x1xf32>
    %12 = vector.broadcast %11 : vector<8x1xf32> to vector<8x112xf32>
    %13 = arith.addf %10, %12 : vector<8x112xf32>
    %cst_12 = arith.constant 0.000000e+00 : f32
    %14 = vector.broadcast %cst_12 : f32 to vector<8x112xf32>
    %15 = arith.cmpf ogt, %13, %14 : vector<8x112xf32>
    %cst_13 = arith.constant 1.000000e-01 : f32
    %16 = vector.broadcast %cst_13 : f32 to vector<8x112xf32>
    %17 = arith.mulf %16, %13 : vector<8x112xf32>
    %18 = arith.select %15, %13, %17 : vector<8x112xi1>, vector<8x112xf32>
    %c0_14 = arith.constant 0 : index
    %c0_15 = arith.constant 0 : index
    %19 = vector.load %arg6[%c0_14, %c0_15] : memref<1x112xf32, #tpu.memory_space<vmem>>, vector<1x112xf32>
    %20 = vector.broadcast %19 : vector<1x112xf32> to vector<8x112xf32>
    %21 = arith.mulf %18, %20 : vector<8x112xf32>
    %22 = arith.truncf %21 : vector<8x112xf32> to vector<8x112xbf16>
    %23 = vector.extract_strided_slice %22 {offsets = [0, 0], sizes = [8, 88], strides = [1, 1]} : vector<8x112xbf16> to vector<8x88xbf16>
    %24 = vector.extract_strided_slice %22 {offsets = [0, 1], sizes = [8, 88], strides = [1, 1]} : vector<8x112xbf16> to vector<8x88xbf16>
    %25 = vector.extract_strided_slice %22 {offsets = [0, 2], sizes = [8, 88], strides = [1, 1]} : vector<8x112xbf16> to vector<8x88xbf16>
    %26 = vector.extract_strided_slice %22 {offsets = [0, 11], sizes = [8, 88], strides = [1, 1]} : vector<8x112xbf16> to vector<8x88xbf16>
    %27 = vector.extract_strided_slice %22 {offsets = [0, 12], sizes = [8, 88], strides = [1, 1]} : vector<8x112xbf16> to vector<8x88xbf16>
    %28 = vector.extract_strided_slice %22 {offsets = [0, 13], sizes = [8, 88], strides = [1, 1]} : vector<8x112xbf16> to vector<8x88xbf16>
    %29 = vector.extract_strided_slice %22 {offsets = [0, 22], sizes = [8, 88], strides = [1, 1]} : vector<8x112xbf16> to vector<8x88xbf16>
    %30 = vector.extract_strided_slice %22 {offsets = [0, 23], sizes = [8, 88], strides = [1, 1]} : vector<8x112xbf16> to vector<8x88xbf16>
    %31 = vector.extract_strided_slice %22 {offsets = [0, 24], sizes = [8, 88], strides = [1, 1]} : vector<8x112xbf16> to vector<8x88xbf16>
    %32 = tpu.concatenate %23, %24, %25, %26, %27, %28, %29, %30, %31 in 0 : vector<8x88xbf16>, vector<8x88xbf16>, vector<8x88xbf16>, vector<8x88xbf16>, vector<8x88xbf16>, vector<8x88xbf16>, vector<8x88xbf16>, vector<8x88xbf16>, vector<8x88xbf16> -> vector<72x88xbf16>
    %c0_16 = arith.constant 0 : index
    %c0_17 = arith.constant 0 : index
    %33 = vector.load %arg4[%c0_16, %c0_17] : memref<8x72xbf16, #tpu.memory_space<vmem>>, vector<8x72xbf16>
    %cst_18 = arith.constant dense<0.000000e+00> : vector<8x88xf32>
    %34 = tpu.matmul %33, %32, %cst_18 {dimension_numbers = #tpu.dot_dimension_numbers<[1], [0], [0], [1], [0, 0, 1, 1], [], []>} : vector<8x72xbf16>, vector<72x88xbf16>, vector<8x88xf32> -> vector<8x88xf32>
    %c0_19 = arith.constant 0 : index
    %c0_20 = arith.constant 0 : index
    %35 = vector.load %arg5[%c0_19, %c0_20] : memref<8x1xf32, #tpu.memory_space<vmem>>, vector<8x1xf32>
    %36 = vector.broadcast %35 : vector<8x1xf32> to vector<8x88xf32>
    %37 = arith.addf %34, %36 : vector<8x88xf32>
    %cst_21 = arith.constant 0.000000e+00 : f32
    %38 = vector.broadcast %cst_21 : f32 to vector<8x88xf32>
    %39 = arith.cmpf ogt, %37, %38 : vector<8x88xf32>
    %cst_22 = arith.constant 1.000000e-01 : f32
    %40 = vector.broadcast %cst_22 : f32 to vector<8x88xf32>
    %41 = arith.mulf %40, %37 : vector<8x88xf32>
    %42 = arith.select %39, %37, %41 : vector<8x88xi1>, vector<8x88xf32>
    %43 = vector.extract_strided_slice %42 {offsets = [0, 0], sizes = [8, 8], strides = [1, 1]} : vector<8x88xf32> to vector<8x8xf32>
    %44 = vector.extract_strided_slice %42 {offsets = [0, 11], sizes = [8, 8], strides = [1, 1]} : vector<8x88xf32> to vector<8x8xf32>
    %45 = vector.extract_strided_slice %42 {offsets = [0, 22], sizes = [8, 8], strides = [1, 1]} : vector<8x88xf32> to vector<8x8xf32>
    %46 = vector.extract_strided_slice %42 {offsets = [0, 33], sizes = [8, 8], strides = [1, 1]} : vector<8x88xf32> to vector<8x8xf32>
    %47 = vector.extract_strided_slice %42 {offsets = [0, 44], sizes = [8, 8], strides = [1, 1]} : vector<8x88xf32> to vector<8x8xf32>
    %48 = vector.extract_strided_slice %42 {offsets = [0, 55], sizes = [8, 8], strides = [1, 1]} : vector<8x88xf32> to vector<8x8xf32>
    %49 = vector.extract_strided_slice %42 {offsets = [0, 66], sizes = [8, 8], strides = [1, 1]} : vector<8x88xf32> to vector<8x8xf32>
    %50 = vector.extract_strided_slice %42 {offsets = [0, 77], sizes = [8, 8], strides = [1, 1]} : vector<8x88xf32> to vector<8x8xf32>
    %51 = tpu.concatenate %43, %44, %45, %46, %47, %48, %49, %50 in 1 : vector<8x8xf32>, vector<8x8xf32>, vector<8x8xf32>, vector<8x8xf32>, vector<8x8xf32>, vector<8x8xf32>, vector<8x8xf32>, vector<8x8xf32> -> vector<8x64xf32>
    %c0_23 = arith.constant 0 : index
    %c0_24 = arith.constant 0 : index
    %c0_25 = arith.constant 0 : index
    %52 = vector.load %arg7[%c0_23, %c0_24, %c0_25] : memref<1x8x64xf32, #tpu.memory_space<vmem>>, vector<1x8x64xf32>
    %53 = vector.shape_cast %52 : vector<1x8x64xf32> to vector<8x64xf32>
    %54 = vector.shape_cast %51 : vector<8x64xf32> to vector<1x8x64xf32>
    tpu.vector_store %arg7[%c0_23, %c0_24, %c0_25], %54 {strides = array<i32>} : memref<1x8x64xf32, #tpu.memory_space<vmem>>, vector<1x8x64xf32>,
    return
  }
  func.func @transform_0(%arg0: i32) -> (i32, i32, i32) {
    %c0_i32 = arith.constant 0 : i32
    %c0_i32_0 = arith.constant 0 : i32
    %c0_i32_1 = arith.constant 0 : i32
    return %arg0, %c0_i32, %c0_i32_0 : i32, i32, i32
  }
  func.func @transform_1(%arg0: i32) -> (i32, i32) {
    %c0_i32 = arith.constant 0 : i32
    %c0_i32_0 = arith.constant 0 : i32
    %c0_i32_1 = arith.constant 0 : i32
    return %c0_i32, %c0_i32_0 : i32, i32
  }
  func.func @transform_2(%arg0: i32) -> (i32, i32) {
    %c0_i32 = arith.constant 0 : i32
    %c0_i32_0 = arith.constant 0 : i32
    %c0_i32_1 = arith.constant 0 : i32
    return %c0_i32, %c0_i32_0 : i32, i32
  }
  func.func @transform_3(%arg0: i32) -> (i32, i32) {
    %c0_i32 = arith.constant 0 : i32
    %c0_i32_0 = arith.constant 0 : i32
    %c0_i32_1 = arith.constant 0 : i32
    return %c0_i32, %c0_i32_0 : i32, i32
  }
  func.func @transform_4(%arg0: i32) -> (i32, i32) {
    %c0_i32 = arith.constant 0 : i32
    %c0_i32_0 = arith.constant 0 : i32
    %c0_i32_1 = arith.constant 0 : i32
    return %c0_i32, %c0_i32_0 : i32, i32
  }
  func.func @transform_5(%arg0: i32) -> (i32, i32) {
    %c0_i32 = arith.constant 0 : i32
    %c0_i32_0 = arith.constant 0 : i32
    %c0_i32_1 = arith.constant 0 : i32
    return %c0_i32, %c0_i32_0 : i32, i32
  }
  func.func @transform_6(%arg0: i32) -> (i32, i32, i32) {
    %c0_i32 = arith.constant 0 : i32
    %c0_i32_0 = arith.constant 0 : i32
    %c0_i32_1 = arith.constant 0 : i32
    return %arg0, %c0_i32, %c0_i32_0 : i32, i32, i32
  }
}

</mosaic_0001>

<llo_original>
// kernel: feature_extractor_forward.1
$region0: #{feature_extractor_forward.1}
  #allocation0 [shape = 'u32[]', space=smem, size = 0x4, offset = 0x4, fixed_abs, tag = 'smem constant byte address 0x4 - core index']
  #allocation1 [shape = 'u32[144,128]{1,0:T(1,128)}', space=vmem, size = 0x12000, scoped, tag = 'internal scratch']
  %s0 = inlined_call_operand.vmem [shape: bf16[2,16,132], index: 0, kind: input, shape index: {}]
  %s1 = inlined_call_operand.vmem [shape: bf16[8,64], index: 1, kind: input, shape index: {}]
  %s2 = inlined_call_operand.vmem [shape: f32[8,1], index: 2, kind: input, shape index: {}]
  %s3 = inlined_call_operand.vmem [shape: bf16[8,72], index: 3, kind: input, shape index: {}]
  %s4 = inlined_call_operand.vmem [shape: f32[8,1], index: 4, kind: input, shape index: {}]
  %s5 = inlined_call_operand.vmem [shape: f32[1,112], index: 5, kind: input, shape index: {}]
  %s6 = inlined_call_operand.vmem [shape: f32[2,8,64], index: 6, kind: output, shape index: {}]
  %s7 = sld [smem:[#allocation0]]
  $region57: #{feature_extractor_forward.1} parent=0
    _
  %s9 = ssub.s32 1, %s7
  %s10 = scalar_select 0, %s9, %s7
  loop: start=0, step=1, limit=4
  $region2: #{feature_extractor_forward.1} parent=0 // loop_pre_header
    _
  $region3: #{feature_extractor_forward.1} parent=0 // loop_header
    %s12 = sphi 0, %s16
    %p13 = scmp.ge.s32.totalorder %s12, 4
    %s22 = sphi 0, %s24
    %s25 = sphi 0, %s22
    %s26 = sphi 0, %s25
    %s42 = sphi 0, %s26
    %s46 = sphi 0, %s46
    %s48 = sphi 0, %s46
    %s49 = sphi 0, %s48
    %s63 = sphi 0, %s49
    %s67 = sphi 0, %s67
    %s69 = sphi 0, %s67
    %s70 = sphi 0, %s69
    %s84 = sphi 0, %s70
    %s88 = sphi 0, %s88
    %s90 = sphi 0, %s88
    %s91 = sphi 0, %s90
    %s105 = sphi 0, %s91
    %s109 = sphi 0, %s109
    %s111 = sphi 0, %s109
    %s112 = sphi 0, %s111
    %s126 = sphi 0, %s112
    %s130 = sphi 0, %s130
    %s132 = sphi 0, %s130
    %s133 = sphi 0, %s132
    %s147 = sphi 0, %s133
    %s153 = sphi 0, %s155
    %s156 = sphi 0, %s153
    %s157 = sphi 0, %s156
    %s173 = sphi 0, %s157
  $region4: #{feature_extractor_forward.1} parent=0 // loop_header_branch
    %15 = sbr.rel (%p13) target = $region8
  $region5: #{feature_extractor_forward.1} parent=0 // loop_body
    %s17 = ssub.s32 %s12, 1
    %s18 = ssub.s32 %s12, 2
    %s19 = sadd.s32 %s12, 1
    %s20 = ssub.s32 %s12, %s19
    %p21 = scmp.eq.s32.totalorder %s20, 0
    %s23 = sadd.s32 %s22, 1
    %s24 = scalar_select %p21, %s22, %s23
    %p27 = pneg %p21
    %p28 = scmp.eq.s32.totalorder %s12, 1
    %p29 = por %p27, %p28
    %p30 = scmp.ne.s32.totalorder %s22, %s25
    %p31 = scmp.eq.s32.totalorder %s12, 0
    %p32 = por %p30, %p31
    %p33 = scmp.ne.s32.totalorder %s22, %s25
    %p34 = scmp.eq.s32.totalorder %s17, 1
    %p35 = por %p33, %p34
    %p36 = scmp.ne.s32.totalorder %s25, %s26
    %p37 = scmp.eq.s32.totalorder %s17, 0
    %p38 = por %p36, %p37
    %p39 = scmp.ne.s32.totalorder %s25, %s26
    %p40 = scmp.eq.s32.totalorder %s18, 1
    %p41 = por %p39, %p40
    %p43 = scmp.ne.s32.totalorder %s26, %s42
    %p44 = scmp.eq.s32.totalorder %s18, 0
    %p45 = por %p43, %p44
    %s47 = sadd.s32 %s46, 1
    %p50 = scmp.eq.s32.totalorder %s12, 1
    %p51 = scmp.ne.s32.totalorder %s46, %s48
    %p52 = scmp.eq.s32.totalorder %s12, 0
    %p53 = por %p51, %p52
    %p54 = scmp.ne.s32.totalorder %s46, %s48
    %p55 = scmp.eq.s32.totalorder %s17, 1
    %p56 = por %p54, %p55
    %p57 = scmp.ne.s32.totalorder %s48, %s49
    %p58 = scmp.eq.s32.totalorder %s17, 0
    %p59 = por %p57, %p58
    %p60 = scmp.ne.s32.totalorder %s48, %s49
    %p61 = scmp.eq.s32.totalorder %s18, 1
    %p62 = por %p60, %p61
    %p64 = scmp.ne.s32.totalorder %s49, %s63
    %p65 = scmp.eq.s32.totalorder %s18, 0
    %p66 = por %p64, %p65
    %s68 = sadd.s32 %s67, 1
    %p71 = scmp.eq.s32.totalorder %s12, 1
    %p72 = scmp.ne.s32.totalorder %s67, %s69
    %p73 = scmp.eq.s32.totalorder %s12, 0
    %p74 = por %p72, %p73
    %p75 = scmp.ne.s32.totalorder %s67, %s69
    %p76 = scmp.eq.s32.totalorder %s17, 1
    %p77 = por %p75, %p76
    %p78 = scmp.ne.s32.totalorder %s69, %s70
    %p79 = scmp.eq.s32.totalorder %s17, 0
    %p80 = por %p78, %p79
    %p81 = scmp.ne.s32.totalorder %s69, %s70
    %p82 = scmp.eq.s32.totalorder %s18, 1
    %p83 = por %p81, %p82
    %p85 = scmp.ne.s32.totalorder %s70, %s84
    %p86 = scmp.eq.s32.totalorder %s18, 0
    %p87 = por %p85, %p86
    %s89 = sadd.s32 %s88, 1
    %p92 = scmp.eq.s32.totalorder %s12, 1
    %p93 = scmp.ne.s32.totalorder %s88, %s90
    %p94 = scmp.eq.s32.totalorder %s12, 0
    %p95 = por %p93, %p94
    %p96 = scmp.ne.s32.totalorder %s88, %s90
    %p97 = scmp.eq.s32.totalorder %s17, 1
    %p98 = por %p96, %p97
    %p99 = scmp.ne.s32.totalorder %s90, %s91
    %p100 = scmp.eq.s32.totalorder %s17, 0
    %p101 = por %p99, %p100
    %p102 = scmp.ne.s32.totalorder %s90, %s91
    %p103 = scmp.eq.s32.totalorder %s18, 1
    %p104 = por %p102, %p103
    %p106 = scmp.ne.s32.totalorder %s91, %s105
    %p107 = scmp.eq.s32.totalorder %s18, 0
    %p108 = por %p106, %p107
    %s110 = sadd.s32 %s109, 1
    %p113 = scmp.eq.s32.totalorder %s12, 1
    %p114 = scmp.ne.s32.totalorder %s109, %s111
    %p115 = scmp.eq.s32.totalorder %s12, 0
    %p116 = por %p114, %p115
    %p117 = scmp.ne.s32.totalorder %s109, %s111
    %p118 = scmp.eq.s32.totalorder %s17, 1
    %p119 = por %p117, %p118
    %p120 = scmp.ne.s32.totalorder %s111, %s112
    %p121 = scmp.eq.s32.totalorder %s17, 0
    %p122 = por %p120, %p121
    %p123 = scmp.ne.s32.totalorder %s111, %s112
    %p124 = scmp.eq.s32.totalorder %s18, 1
    %p125 = por %p123, %p124
    %p127 = scmp.ne.s32.totalorder %s112, %s126
    %p128 = scmp.eq.s32.totalorder %s18, 0
    %p129 = por %p127, %p128
    %s131 = sadd.s32 %s130, 1
    %p134 = scmp.eq.s32.totalorder %s12, 1
    %p135 = scmp.ne.s32.totalorder %s130, %s132
    %p136 = scmp.eq.s32.totalorder %s12, 0
    %p137 = por %p135, %p136
    %p138 = scmp.ne.s32.totalorder %s130, %s132
    %p139 = scmp.eq.s32.totalorder %s17, 1
    %p140 = por %p138, %p139
    %p141 = scmp.ne.s32.totalorder %s132, %s133
    %p142 = scmp.eq.s32.totalorder %s17, 0
    %p143 = por %p141, %p142
    %p144 = scmp.ne.s32.totalorder %s132, %s133
    %p145 = scmp.eq.s32.totalorder %s18, 1
    %p146 = por %p144, %p145
    %p148 = scmp.ne.s32.totalorder %s133, %s147
    %p149 = scmp.eq.s32.totalorder %s18, 0
    %p150 = por %p148, %p149
    %s151 = ssub.s32 %s12, %s19
    %p152 = scmp.eq.s32.totalorder %s151, 0
    %s154 = sadd.s32 %s153, 1
    %s155 = scalar_select %p152, %s153, %s154
    %p158 = pneg %p152
    %p159 = scmp.eq.s32.totalorder %s12, 1
    %p160 = por %p158, %p159
    %p161 = scmp.ne.s32.totalorder %s153, %s156
    %p162 = scmp.eq.s32.totalorder %s12, 0
    %p163 = por %p161, %p162
    %p164 = scmp.ne.s32.totalorder %s153, %s156
    %p165 = scmp.eq.s32.totalorder %s17, 1
    %p166 = por %p164, %p165
    %p167 = scmp.ne.s32.totalorder %s156, %s157
    %p168 = scmp.eq.s32.totalorder %s17, 0
    %p169 = por %p167, %p168
    %p170 = scmp.ne.s32.totalorder %s156, %s157
    %p171 = scmp.eq.s32.totalorder %s18, 1
    %p172 = por %p170, %p171
    %p174 = scmp.ne.s32.totalorder %s157, %s173
    %p175 = scmp.eq.s32.totalorder %s18, 0
    %p176 = por %p174, %p175
    %p177 = scmp.le.s32.totalorder 1, %s12
    %p178 = scmp.lt.s32.totalorder %s12, 3
    %p179 = pnand %p177, %p178
    %p180 = pneg %p179
    // Predicated region
    $region9: #{feature_extractor_forward.1} parent=5 // pred_check
      _
    $region10: #{feature_extractor_forward.1} parent=5 // pred_check_branch
      %182 = sbr.rel (%p179) target = $region12
    $region11: #{feature_extractor_forward.1} parent=5 // pred_region
      %s183 = ssub.s32 %s12, 1
      // Predicated region
      $region13: #{feature_extractor_forward.1} parent=11 // pred_check
        %p184 = pneg %p59
      $region14: #{feature_extractor_forward.1} parent=11 // pred_check_branch
        %186 = sbr.rel (%p184) target = $region16
      $region15: #{feature_extractor_forward.1} parent=11 // pred_region
        _
      $region16: #{feature_extractor_forward.1} parent=11 // pred_fallthru
        _
      // Predicated region
      $region17: #{feature_extractor_forward.1} parent=11 // pred_check
        %p187 = pneg %p80
      $region18: #{feature_extractor_forward.1} parent=11 // pred_check_branch
        %189 = sbr.rel (%p187) target = $region20
      $region19: #{feature_extractor_forward.1} parent=11 // pred_region
        _
      $region20: #{feature_extractor_forward.1} parent=11 // pred_fallthru
        _
      // Predicated region
      $region21: #{feature_extractor_forward.1} parent=11 // pred_check
        %p190 = pneg %p101
      $region22: #{feature_extractor_forward.1} parent=11 // pred_check_branch
        %192 = sbr.rel (%p190) target = $region24
      $region23: #{feature_extractor_forward.1} parent=11 // pred_region
        _
      $region24: #{feature_extractor_forward.1} parent=11 // pred_fallthru
        _
      // Predicated region
      $region25: #{feature_extractor_forward.1} parent=11 // pred_check
        %p193 = pneg %p122
      $region26: #{feature_extractor_forward.1} parent=11 // pred_check_branch
        %195 = sbr.rel (%p193) target = $region28
      $region27: #{feature_extractor_forward.1} parent=11 // pred_region
        _
      $region28: #{feature_extractor_forward.1} parent=11 // pred_fallthru
        _
      // Predicated region
      $region29: #{feature_extractor_forward.1} parent=11 // pred_check
        %p196 = pneg %p143
      $region30: #{feature_extractor_forward.1} parent=11 // pred_check_branch
        %198 = sbr.rel (%p196) target = $region32
      $region31: #{feature_extractor_forward.1} parent=11 // pred_region
        _
      $region32: #{feature_extractor_forward.1} parent=11 // pred_fallthru
        _
    $region12: #{feature_extractor_forward.1} parent=5 // pred_fallthru
      _
    %p199 = scmp.lt.s32.totalorder %s12, 2
    // Predicated region
    $region33: #{feature_extractor_forward.1} parent=5 // pred_check
      %p200 = pneg %p199
    $region34: #{feature_extractor_forward.1} parent=5 // pred_check_branch
      %202 = sbr.rel (%p200) target = $region36
    $region35: #{feature_extractor_forward.1} parent=5 // pred_region
      // Predicated region
      $region37: #{feature_extractor_forward.1} parent=35 // pred_check
        %p203 = pneg %p32
      $region38: #{feature_extractor_forward.1} parent=35 // pred_check_branch
        %205 = sbr.rel (%p203) target = $region40
      $region39: #{feature_extractor_forward.1} parent=35 // pred_region
        %p206 = scmp.lt.s32.totalorder %s12, 1
        %s207 = scalar_select %p206, %s12, 1
        %s208 = smul.addr %s207, 4
        %s209 = smul.addr %s208, 4
        %s210 = scalar_lea.vmem %s0, %s209
      $region40: #{feature_extractor_forward.1} parent=35 // pred_fallthru
        _
    $region36: #{feature_extractor_forward.1} parent=5 // pred_fallthru
      _
    %p211 = scmp.le.s32.totalorder 1, %s12
    %p212 = scmp.lt.s32.totalorder %s12, 3
    %p213 = pnand %p211, %p212
    %p214 = pneg %p213
    // Predicated region
    $region41: #{feature_extractor_forward.1} parent=5 // pred_check
      _
    $region42: #{feature_extractor_forward.1} parent=5 // pred_check_branch
      %216 = sbr.rel (%p213) target = $region44
    $region43: #{feature_extractor_forward.1} parent=5 // pred_region
      %s217 = ssub.s32 %s12, 1
      %p218 = scmp.lt.s32.totalorder %s17, 1
      %s219 = scalar_select %p218, %s17, 1
      %s220 = smul.addr %s219, 4
      %s221 = smul.addr %s220, 4
      %s222 = scalar_lea.vmem %s0, %s221
      %p223 = pneg %p38
      %p224 = pneg %p35
      %p225 = pneg %p59
      %p226 = pneg %p56
      %p227 = pneg %p80
      %p228 = pneg %p77
      %p229 = pneg %p101
      %p230 = pneg %p98
      %p231 = pneg %p122
      %p232 = pneg %p119
      %p233 = pneg %p143
      %p234 = pneg %p140
      %p235 = pneg %p169
      %p236 = pneg %p166
      %p237 = scmp.lt.s32.totalorder %s17, 1
      %s238 = scalar_select %p237, %s17, 1
      %s239 = smul.addr %s238, 8
      %s240 = scalar_lea.vmem %s6, %s239
      %p241 = scmp.lt.s32.totalorder %s17, 1
      %s242 = scalar_select %p241, %s17, 1
      %s243 = smul.addr %s242, 4
      %s244 = smul.addr %s243, 4
      %s245 = scalar_lea.vmem %s0, %s244
      %p246 = scmp.lt.s32.totalorder %s17, 1
      %s247 = scalar_select %p246, %s17, 1
      %s248 = smul.addr %s247, 8
      %s249 = scalar_lea.vmem %s6, %s248
      %v251 = vld [vmem:[%s245] sm:$0xf]
      %v252 = vld [vmem:[%s245 + $0x8] sm:$0xf]
      %v255 = vunpack.c.l.b16 %v251
      %v256 = vunpack.c.l.b16 %v252
      %v257 = vpack.c.b16 %v256, %v255
      %259 = vrot.lane.b32.xlu0 %v257, 127
      %v260 = vpop.permute.xlu0 %259
      %262 = vrot.lane.b32.xlu0 %v257, 117
      %v263 = vpop.permute.xlu0 %262
      %265 = vrot.lane.b32.xlu0 %v257, 116
      %v266 = vpop.permute.xlu0 %265
      %v268 = vld [vmem:[%s1] sm:$0xf]
      %v269 = vld [vmem:[%s2] sm:$0xff]
      %271 = vset.pattern.permute.xlu0 0
      %272 = vperm.xlu0 %271, %v269
      %v273 = vpop.permute.xlu0 %272
      %vm275 = vcmask 523264
      %v277 = vsel %vm275, %v268, 0
      %279 = vmatprep.subr.bf16.mxu0 0
      %280 = vmatpush1.bf16.msra.mxu0 %v257
      %281 = vmatprep.subr.bf16.mxu0 0
      %282 = vmatpush1.bf16.msra.mxu0 %v260
      %283 = vmatprep.subr.bf16.mxu0 0
      %284 = vmatpush1.bf16.msra.mxu0 %v263
      %285 = vmatprep.subr.bf16.mxu0 0
      %286 = vmatpush1.bf16.msra.mxu0 %v266
      %287 = vmatprep.subr.bf16.mxu0 0
      %288 = vmatpush1.bf16.msra.mxu0 0
      %289 = vmatprep.subr.bf16.mxu0 0
      %290 = vmatpush1.bf16.msra.mxu0 0
      %291 = vmatprep.subr.bf16.mxu0 0
      %292 = vmatpush1.bf16.msra.mxu0 0
      %293 = vmatprep.subr.bf16.mxu0 0
      %294 = vmatpush1.bf16.msra.mxu0 0
      %295 = vmatprep.subr.bf16.mxu0 0
      %296 = vmatpush1.bf16.msra.mxu0 0
      %297 = vmatprep.subr.bf16.mxu0 0
      %298 = vmatpush1.bf16.msra.mxu0 0
      %299 = vmatprep.subr.bf16.mxu0 0
      %300 = vmatpush1.bf16.msra.mxu0 0
      %301 = vmatprep.subr.bf16.mxu0 0
      %302 = vmatpush1.bf16.msra.mxu0 0
      %303 = vmatprep.subr.bf16.mxu0 0
      %304 = vmatpush1.bf16.msra.mxu0 0
      %305 = vmatprep.subr.bf16.mxu0 0
      %306 = vmatpush1.bf16.msra.mxu0 0
      %307 = vmatprep.subr.bf16.mxu0 0
      %308 = vmatpush1.bf16.msra.mxu0 0
      %309 = vmatprep.subr.bf16.mxu0 0
      %310 = vmatpush1.bf16.msra.mxu0 0
      %311 = vmatprep.mubr.bf16.mxu0 0
      %312 = vmatmul.mubr.bf16.gmra.mrb[0].mxu0 %v277
      %v313 = vpop.f32.mrb[0].mxu0
      %v314 = vadd.f32 %v273, %v313
      %v315 = vpop.f32.mrb[0].mxu0
      %v316 = vpop.f32.mrb[0].mxu0
      %v317 = vpop.f32.mrb[0].mxu0
      %318 = vdwg.mxu0
      %vm319 = vcmp.gt.f32.partialorder %v314, 0.0
      %v320 = vmul.f32 %v314, 0.1
      %v321 = vsel %vm319, %v314, %v320
      %v322 = vld [vmem:[%s5] sm:$0x1]
      %v324 = vlaneseq
      %v325 = vshrl.u32 %v324, 7
      %v326 = vsub.s32 0, %v325
      %v327 = vrot.slane %v322, %v326
      %v329 = vmul.f32 %v321, %v327
      %v330 = vpack.c.bf16 %v329, %v329
      %v332 = vrot.slane %v330, 4
      %333 = vrot.lane.b32.xlu0 %v332, 127
      %v334 = vpop.permute.xlu0 %333
      %335 = vrot.lane.b32.xlu0 %v330, 126
      %v336 = vpop.permute.xlu0 %335
      %337 = vrot.lane.b32.xlu0 %v332, 117
      %v338 = vpop.permute.xlu0 %337
      %339 = vrot.lane.b32.xlu0 %v330, 116
      %v340 = vpop.permute.xlu0 %339
      %341 = vrot.lane.b32.xlu0 %v332, 115
      %v342 = vpop.permute.xlu0 %341
      %343 = vrot.lane.b32.xlu0 %v330, 106
      %v344 = vpop.permute.xlu0 %343
      %345 = vrot.lane.b32.xlu0 %v332, 105
      %v346 = vpop.permute.xlu0 %345
      %347 = vrot.lane.b32.xlu0 %v330, 104
      %v348 = vpop.permute.xlu0 %347
      %vm349 = vcmask 1043456
      %v352 = vsel %vm349, %v330, %v334
      %v356 = vsel %vm349, %v336, %v338
      %v360 = vsel %vm349, %v340, %v342
      %v364 = vsel %vm349, %v344, %v346
      %v366 = vld [vmem:[%s3] sm:$0xf]
      %v367 = vld [vmem:[%s4] sm:$0xff]
      %369 = vset.pattern.permute.xlu0 0
      %370 = vperm.xlu0 %369, %v367
      %v371 = vpop.permute.xlu0 %370
      %vm373 = vcmask 588800
      %v375 = vsel %vm373, %v366, 0
      %v378 = vsel %vm349, %v348, 0
      %380 = vmatprep.subr.bf16.mxu0 0
      %381 = vmatpush1.bf16.msra.mxu0 %v352
      %382 = vmatprep.subr.bf16.mxu0 0
      %383 = vmatpush1.bf16.msra.mxu0 %v356
      %384 = vmatprep.subr.bf16.mxu0 0
      %385 = vmatpush1.bf16.msra.mxu0 %v360
      %386 = vmatprep.subr.bf16.mxu0 0
      %387 = vmatpush1.bf16.msra.mxu0 %v364
      %388 = vmatprep.subr.bf16.mxu0 0
      %389 = vmatpush1.bf16.msra.mxu0 %v378
      %390 = vmatprep.subr.bf16.mxu0 0
      %391 = vmatpush1.bf16.msra.mxu0 0
      %392 = vmatprep.subr.bf16.mxu0 0
      %393 = vmatpush1.bf16.msra.mxu0 0
      %394 = vmatprep.subr.bf16.mxu0 0
      %395 = vmatpush1.bf16.msra.mxu0 0
      %396 = vmatprep.subr.bf16.mxu0 0
      %397 = vmatpush1.bf16.msra.mxu0 0
      %398 = vmatprep.subr.bf16.mxu0 0
      %399 = vmatpush1.bf16.msra.mxu0 0
      %400 = vmatprep.subr.bf16.mxu0 0
      %401 = vmatpush1.bf16.msra.mxu0 0
      %402 = vmatprep.subr.bf16.mxu0 0
      %403 = vmatpush1.bf16.msra.mxu0 0
      %404 = vmatprep.subr.bf16.mxu0 0
      %405 = vmatpush1.bf16.msra.mxu0 0
      %406 = vmatprep.subr.bf16.mxu0 0
      %407 = vmatpush1.bf16.msra.mxu0 0
      %408 = vmatprep.subr.bf16.mxu0 0
      %409 = vmatpush1.bf16.msra.mxu0 0
      %410 = vmatprep.subr.bf16.mxu0 0
      %411 = vmatpush1.bf16.msra.mxu0 0
      %412 = vmatprep.mubr.bf16.mxu0 0
      %413 = vmatmul.mubr.bf16.gmra.mrb[0].mxu0 %v375
      %v414 = vpop.f32.mrb[0].mxu0
      %v415 = vadd.f32 %v371, %v414
      %v416 = vpop.f32.mrb[0].mxu0
      %v417 = vpop.f32.mrb[0].mxu0
      %v418 = vpop.f32.mrb[0].mxu0
      %419 = vdwg.mxu0
      %vm420 = vcmp.gt.f32.partialorder %v415, 0.0
      %v421 = vmul.f32 %v415, 0.1
      %v422 = vsel %vm420, %v415, %v421
      %424 = vrot.lane.b32.xlu0 %v422, 125
      %v425 = vpop.permute.xlu0 %424
      %427 = vrot.lane.b32.xlu0 %v422, 122
      %v428 = vpop.permute.xlu0 %427
      %430 = vrot.lane.b32.xlu0 %v422, 119
      %v431 = vpop.permute.xlu0 %430
      %433 = vrot.lane.b32.xlu0 %v422, 116
      %v434 = vpop.permute.xlu0 %433
      %436 = vrot.lane.b32.xlu0 %v422, 113
      %v437 = vpop.permute.xlu0 %436
      %439 = vrot.lane.b32.xlu0 %v422, 110
      %v440 = vpop.permute.xlu0 %439
      %442 = vrot.lane.b32.xlu0 %v422, 107
      %v443 = vpop.permute.xlu0 %442
      %vm445 = vcmask 64512
      %v446 = vsel %vm445, %v422, %v425
      %vm447 = vcmask 130048
      %v448 = vsel %vm447, %v446, %v428
      %vm449 = vcmask 195584
      %v450 = vsel %vm449, %v448, %v431
      %vm451 = vcmask 261120
      %v452 = vsel %vm451, %v450, %v434
      %vm453 = vcmask 326656
      %v454 = vsel %vm453, %v452, %v437
      %vm455 = vcmask 392192
      %v456 = vsel %vm455, %v454, %v440
      %vm457 = vcmask 457728
      %v458 = vsel %vm457, %v456, %v443
      %459 = vst.msk [vmem:[%s249] sm:$0xff] %vm275, %v458
      %p460 = scmp.lt.s32.totalorder %s17, 1
      %s461 = scalar_select %p460, %s17, 1
      %s462 = smul.addr %s461, 8
      %s463 = scalar_lea.vmem %s6, %s462
      // Predicated region
      $region45: #{feature_extractor_forward.1} parent=43 // pred_check
        %p464 = pneg %p166
      $region46: #{feature_extractor_forward.1} parent=43 // pred_check_branch
        %466 = sbr.rel (%p464) target = $region48
      $region47: #{feature_extractor_forward.1} parent=43 // pred_region
        _
      $region48: #{feature_extractor_forward.1} parent=43 // pred_fallthru
        _
    $region44: #{feature_extractor_forward.1} parent=5 // pred_fallthru
      _
    %p467 = scmp.le.s32.totalorder 2, %s12
    // Predicated region
    $region49: #{feature_extractor_forward.1} parent=5 // pred_check
      %p468 = pneg %p467
    $region50: #{feature_extractor_forward.1} parent=5 // pred_check_branch
      %470 = sbr.rel (%p468) target = $region52
    $region51: #{feature_extractor_forward.1} parent=5 // pred_region
      %s471 = ssub.s32 %s12, 2
      // Predicated region
      $region53: #{feature_extractor_forward.1} parent=51 // pred_check
        %p472 = pneg %p172
      $region54: #{feature_extractor_forward.1} parent=51 // pred_check_branch
        %474 = sbr.rel (%p472) target = $region56
      $region55: #{feature_extractor_forward.1} parent=51 // pred_region
        %p475 = scmp.lt.s32.totalorder %s18, 1
        %s476 = scalar_select %p475, %s18, 1
        %s477 = smul.addr %s476, 8
        %s478 = scalar_lea.vmem %s6, %s477
      $region56: #{feature_extractor_forward.1} parent=51 // pred_fallthru
        _
    $region52: #{feature_extractor_forward.1} parent=5 // pred_fallthru
      _
  $region6: #{feature_extractor_forward.1} parent=0 // loop_footer
    %s16 = sadd.s32 1, %s12
  $region7: #{feature_extractor_forward.1} parent=0 // loop_footer_branch
    %11 = sbr.rel target = $region3
  $region8: #{feature_extractor_forward.1} parent=0 // loop_exit
    _

</llo_original>
